<compile_context>
chip_gen: v5e
topology: v5e:2x2
jax: 0.10.0
libtpu: 0.0.40
codegen_flags: <defaults>
</compile_context>

<pallas_src>
import functools
import math

import jax
import jax.numpy as jnp
from jax.experimental import pallas as pl
from jax.experimental.pallas import tpu as pltpu

# Deterministic "parameters" (the module's default mean / std buffers).
DEFAULT_MEAN = (0.0, 0.0, 0.0, 0.0)
DEFAULT_STD = (0.1, 0.1, 0.2, 0.2)

_LANES = 128
_SUBLANES = 8
_CHUNK = _SUBLANES * _LANES          # 1024: N padding granule (8x128 rows)
_PALLAS_MIN_N = 65536                # below this, fused XLA is faster

_PI = math.pi
_PI_2 = math.pi / 2.0
_PI_4 = math.pi / 4.0
_TAN_PI_8 = 0.4142135623730951
_TAN_3PI_8 = 2.414213562373095


# ----------------------------------------------------------------------------
# hardware-aware sizing
# ----------------------------------------------------------------------------
def _vmem_budget():
    """(vmem_limit_bytes, pipeline_budget_bytes) for this TPU generation."""
    kind = ""
    try:
        kind = jax.devices()[0].device_kind.lower()
    except Exception:
        pass
    mib = 1 << 20
    if "v7" in kind:
        # 64 MiB physical VMEM per TensorCore -> leave headroom.
        return 48 * mib, 32 * mib
    if "v6" in kind or "trillium" in kind:
        # 128 MiB physical; raise the 32 MiB scoped default.
        return 64 * mib, 48 * mib
    if "v5" in kind:
        # 128 MiB physical but 16 MiB scoped default -> must raise explicitly.
        return 64 * mib, 48 * mib
    # Unknown generation: conservative.
    return 32 * mib, 24 * mib


def _pick_tile_r(rows, total_channels, budget_bytes, max_tile_r=None):
    """Largest power-of-two sublane-row tile keeping double-buffered I/O blocks
    plus ~one block of elementwise temporaries inside the VMEM budget."""
    bytes_per_row = total_channels * _LANES * 4          # f32
    cap = max(8, budget_bytes // (bytes_per_row * 3))    # 2x buffers + temps
    tile_r = 8
    while tile_r * 2 <= min(cap, 2048):
        tile_r *= 2
    if max_tile_r is not None:
        tile_r = min(tile_r, max_tile_r)
    return max(8, min(tile_r, rows))


def _to_slab(x_nc, npad):
    """[N, C] -> coordinate-major [C, npad // 128, 128] float32, zero-padded."""
    n, c = x_nc.shape
    x = x_nc.astype(jnp.float32).T                     # [C, N]
    x = jnp.pad(x, ((0, 0), (0, npad - n)))            # [C, npad]
    return x.reshape(c, npad // _LANES, _LANES)


# ----------------------------------------------------------------------------
# arctan2 from mul/div/where/abs only (guaranteed Mosaic lowering)
# ----------------------------------------------------------------------------
def _atan_pos(x):
    """Cephes-style float32 arctan for x >= 0 (abs err ~3e-7)."""
    big = x > _TAN_3PI_8
    mid = x > _TAN_PI_8
    z_big = -1.0 / jnp.where(x == 0.0, 1.0, x)
    z_mid = (x - 1.0) / (x + 1.0)
    z = jnp.where(big, z_big, jnp.where(mid, z_mid, x))
    base = jnp.where(big, _PI_2, jnp.where(mid, _PI_4, 0.0))
    zz = z * z
    poly = ((8.05374449538e-2 * zz - 1.38776856032e-1) * zz
            + 1.99777106478e-1) * zz - 3.33329491539e-1
    return base + z + z * zz * poly


def _atan2(y, x):
    safe_x = jnp.where(x == 0.0, 1.0, x)
    r = y / safe_x
    a = _atan_pos(jnp.abs(r))
    t = jnp.where(r < 0.0, -a, a)
    pi_adj = jnp.where(y >= 0.0, _PI, -_PI)
    return jnp.where(x > 0.0, t,
           jnp.where(x < 0.0, t + pi_adj,
           jnp.where(y > 0.0, _PI_2,
           jnp.where(y < 0.0, -_PI_2, 0.0))))


# ----------------------------------------------------------------------------
# 2D kernel: stacked input [8, tr, 128] -> out [4, tr, 128]
#   channels: 0..3 boxes [x1,y1,x2,y2], 4..7 deltas [dx,dy,dw,dh]
# ----------------------------------------------------------------------------
def _bbox2d_kernel(in_ref, out_ref, *, mean, std):
    x1 = in_ref[0]
    y1 = in_ref[1]
    x2 = in_ref[2]
    y2 = in_ref[3]

    widths = x2 - x1
    heights = y2 - y1
    ctr_x = x1 + 0.5 * widths
    ctr_y = y1 + 0.5 * heights

    dx = in_ref[4] * std[0] + mean[0]
    dy = in_ref[5] * std[1] + mean[1]
    dw = in_ref[6] * std[2] + mean[2]
    dh = in_ref[7] * std[3] + mean[3]

    pred_ctr_x = ctr_x + dx * widths
    pred_ctr_y = ctr_y + dy * heights
    pred_w = jnp.exp(dw) * widths
    pred_h = jnp.exp(dh) * heights

    out_ref[0] = pred_ctr_x - 0.5 * pred_w
    out_ref[1] = pred_ctr_y - 0.5 * pred_h
    out_ref[2] = pred_ctr_x + 0.5 * pred_w
    out_ref[3] = pred_ctr_y + 0.5 * pred_h


# ----------------------------------------------------------------------------
# 3D kernel: stacked input [28, tr, 128] -> pred [11, tr, 128]
#   channels:  0..3  boxes  [x1, y1, x2, y2]
#              4..15 deltas [dx, dy, dw, dh, cdx, cdy, dz, ds, dc, dw3, dh3, dl3]
#             16..27 selected mean/std flattened:
#                    [z_m, z_s, s_m, s_s, c_m, c_s, w_m, w_s, h_m, h_s, l_m, l_s]
# ----------------------------------------------------------------------------
def _bbox3d_kernel(in_ref, pred_ref, *, mean, std):
    x1 = in_ref[0]
    y1 = in_ref[1]
    x2 = in_ref[2]
    y2 = in_ref[3]

    widths = x2 - x1
    heights = y2 - y1
    ctr_x = x1 + 0.5 * widths
    ctr_y = y1 + 0.5 * heights

    dx = in_ref[4] * std[0] + mean[0]
    dy = in_ref[5] * std[1] + mean[1]
    dw = in_ref[6] * std[2] + mean[2]
    dh = in_ref[7] * std[3] + mean[3]

    pred_ctr_x = ctr_x + dx * widths
    pred_ctr_y = ctr_y + dy * heights
    pred_w2d = jnp.exp(dw) * widths
    pred_h2d = jnp.exp(dh) * heights

    pred_ref[0] = pred_ctr_x - 0.5 * pred_w2d          # x1
    pred_ref[1] = pred_ctr_y - 0.5 * pred_h2d          # y1
    pred_ref[2] = pred_ctr_x + 0.5 * pred_w2d          # x2
    pred_ref[3] = pred_ctr_y + 0.5 * pred_h2d          # y2

    # NOTE: PyTorch source uses std[0]/mean[0] for BOTH cdx and cdy (quirk,
    # reproduced deliberately).
    cdx = in_ref[8] * std[0] + mean[0]
    cdy = in_ref[9] * std[0] + mean[0]
    pred_ref[4] = ctr_x + cdx * widths                 # cx
    pred_ref[5] = ctr_y + cdy * heights                # cy

    pred_ref[6] = in_ref[10] * in_ref[17] + in_ref[16]   # z
    pred_ref[7] = in_ref[13] * in_ref[23] + in_ref[22]   # w
    pred_ref[8] = in_ref[14] * in_ref[25] + in_ref[24]   # h
    pred_ref[9] = in_ref[15] * in_ref[27] + in_ref[26]   # l

    pred_sin = in_ref[11] * in_ref[19] + in_ref[18]
    pred_cos = in_ref[12] * in_ref[21] + in_ref[20]
    pred_ref[10] = _atan2(pred_sin, pred_cos) * 0.5      # alpha


# ----------------------------------------------------------------------------
# pure-XLA implementations (small-N fallback AND correctness reference)
# ----------------------------------------------------------------------------
def _xla_2d(boxes, deltas, mean=DEFAULT_MEAN, std=DEFAULT_STD):
    boxes = boxes.astype(jnp.float32)
    deltas = deltas.astype(jnp.float32)
    w = boxes[..., 2] - boxes[..., 0]
    h = boxes[..., 3] - boxes[..., 1]
    cx = boxes[..., 0] + 0.5 * w
    cy = boxes[..., 1] + 0.5 * h
    dx = deltas[..., 0] * std[0] + mean[0]
    dy = deltas[..., 1] * std[1] + mean[1]
    dw = deltas[..., 2] * std[2] + mean[2]
    dh = deltas[..., 3] * std[3] + mean[3]
    pcx = cx + dx * w
    pcy = cy + dy * h
    pw = jnp.exp(dw) * w
    ph = jnp.exp(dh) * h
    return jnp.stack([pcx - 0.5 * pw, pcy - 0.5 * ph,
                      pcx + 0.5 * pw, pcy + 0.5 * ph], axis=-1)


def _xla_3d_core(boxes, deltas, selected, mean, std):
    boxes = boxes.astype(jnp.float32)
    deltas = deltas.astype(jnp.float32)
    w = boxes[:, 2] - boxes[:, 0]
    h = boxes[:, 3] - boxes[:, 1]
    cx = boxes[:, 0] + 0.5 * w
    cy = boxes[:, 1] + 0.5 * h
    dx = deltas[:, 0] * std[0] + mean[0]
    dy = deltas[:, 1] * std[1] + mean[1]
    dw = deltas[:, 2] * std[2] + mean[2]
    dh = deltas[:, 3] * std[3] + mean[3]
    pcx = cx + dx * w
    pcy = cy + dy * h
    pw = jnp.exp(dw) * w
    ph = jnp.exp(dh) * h
    x1 = pcx - 0.5 * pw
    y1 = pcy - 0.5 * ph
    x2 = pcx + 0.5 * pw
    y2 = pcy + 0.5 * ph
    cdx = deltas[:, 4] * std[0] + mean[0]
    cdy = deltas[:, 5] * std[0] + mean[0]       # std[0]/mean[0] quirk reproduced
    pcx1 = cx + cdx * w
    pcy1 = cy + cdy * h
    pz = deltas[:, 6] * selected[:, 0, 1] + selected[:, 0, 0]
    psin = deltas[:, 7] * selected[:, 1, 1] + selected[:, 1, 0]
    pcos = deltas[:, 8] * selected[:, 2, 1] + selected[:, 2, 0]
    palpha = jnp.arctan2(psin, pcos) / 2.0
    pw3 = deltas[:, 9] * selected[:, 3, 1] + selected[:, 3, 0]
    ph3 = deltas[:, 10] * selected[:, 4, 1] + selected[:, 4, 0]
    pl3 = deltas[:, 11] * selected[:, 5, 1] + selected[:, 5, 0]
    return jnp.stack([x1, y1, x2, y2, pcx1, pcy1, pz, pw3, ph3, pl3, palpha],
                     axis=1)


def _xla_3d(boxes, deltas, anchors_mean_std, label_index,
            mean=DEFAULT_MEAN, std=DEFAULT_STD):
    n = boxes.shape[0]
    selected = anchors_mean_std[jnp.arange(n), label_index].astype(jnp.float32)
    pred = _xla_3d_core(boxes, deltas, selected, mean, std)
    return pred, selected[:, 0, 0] > 0


# ----------------------------------------------------------------------------
# public wrappers
# ----------------------------------------------------------------------------
def bbox_transform_2d(boxes, deltas, mean=DEFAULT_MEAN, std=DEFAULT_STD,
                      *, force_pallas=False, max_tile_r=None):
    """boxes/deltas: [..., 4] -> pred_boxes [..., 4] float32."""
    mean = tuple(float(v) for v in mean)
    std = tuple(float(v) for v in std)

    lead_shape = boxes.shape[:-1]
    n = math.prod(lead_shape)
    if n < _PALLAS_MIN_N and not force_pallas:
        return _xla_2d(boxes, deltas, mean, std)

    npad = max(_CHUNK, ((n + _CHUNK - 1) // _CHUNK) * _CHUNK)
    rows = npad // _LANES
    vmem_limit, budget = _vmem_budget()
    # 8 input channels + 4 output channels stream through VMEM per row.
    tile_r = _pick_tile_r(rows, total_channels=12, budget_bytes=budget,
                          max_tile_r=max_tile_r)

    stacked = jnp.concatenate(
        [boxes.reshape(n, 4).astype(jnp.float32),
         deltas.reshape(n, 4).astype(jnp.float32)], axis=-1)     # [N, 8]
    in_s = _to_slab(stacked, npad)                                # [8, rows, 128]

    in_spec = pl.BlockSpec((8, tile_r, _LANES), lambda i: (0, i, 0))
    out_spec = pl.BlockSpec((4, tile_r, _LANES), lambda i: (0, i, 0))

    out_s = pl.pallas_call(
        functools.partial(_bbox2d_kernel, mean=mean, std=std),
        out_shape=jax.ShapeDtypeStruct((4, rows, _LANES), jnp.float32),
        grid=(pl.cdiv(rows, tile_r),),
        in_specs=[in_spec],
        out_specs=out_spec,
        compiler_params=pltpu.CompilerParams(
            dimension_semantics=("parallel",),
            vmem_limit_bytes=vmem_limit),
    )(in_s)

    out = out_s.reshape(4, npad)[:, :n].T                         # [N, 4]
    return out.reshape(lead_shape + (4,))


def bbox_transform_3d(boxes, deltas, anchors_mean_std, label_index,
                      mean=DEFAULT_MEAN, std=DEFAULT_STD,
                      *, force_pallas=False, max_tile_r=None):
    """boxes [N,4], deltas [N,12], anchors_mean_std [N,types,6,2],
    label_index [N] -> (pred_boxes [N, 11], mask [N] bool)."""
    mean = tuple(float(v) for v in mean)
    std = tuple(float(v) for v in std)
    n = boxes.shape[0]

    # one-hot gather == anchors_mean_std[one_hot_mask] in the PyTorch source.
    selected = anchors_mean_std[jnp.arange(n), label_index].astype(jnp.float32)
    # Mask computed here (fused with the gather) -> no mask DMA stream in-kernel.
    mask = selected[:, 0, 0] > 0

    if n < _PALLAS_MIN_N and not force_pallas:
        return _xla_3d_core(boxes, deltas, selected, mean, std), mask

    npad = max(_CHUNK, ((n + _CHUNK - 1) // _CHUNK) * _CHUNK)
    rows = npad // _LANES
    vmem_limit, budget = _vmem_budget()
    # 28 input channels + 11 output channels stream through VMEM per row.
    tile_r = _pick_tile_r(rows, total_channels=39, budget_bytes=budget,
                          max_tile_r=max_tile_r)

    stacked = jnp.concatenate(
        [boxes.astype(jnp.float32),
         deltas.astype(jnp.float32),
         selected.reshape(n, 12)], axis=-1)                       # [N, 28]
    in_s = _to_slab(stacked, npad)                                 # [28, rows, 128]

    in_spec = pl.BlockSpec((28, tile_r, _LANES), lambda i: (0, i, 0))
    out_spec = pl.BlockSpec((11, tile_r, _LANES), lambda i: (0, i, 0))

    pred_s = pl.pallas_call(
        functools.partial(_bbox3d_kernel, mean=mean, std=std),
        out_shape=jax.ShapeDtypeStruct((11, rows, _LANES), jnp.float32),
        grid=(pl.cdiv(rows, tile_r),),
        in_specs=[in_spec],
        out_specs=out_spec,
        compiler_params=pltpu.CompilerParams(
            dimension_semantics=("parallel",),
            vmem_limit_bytes=vmem_limit),
    )(in_s)

    pred_boxes = pred_s.reshape(11, npad)[:, :n].T                 # [N, 11]
    return pred_boxes, mask


# ----------------------------------------------------------------------------
# self-test
# ----------------------------------------------------------------------------
if __name__ == "__main__":
    key = jax.random.PRNGKey(0)
    k1, k2, k3, k4, k5, k6 = jax.random.split(key, 6)

    # ---- 2D path (small): boxes/deltas [2, 8, 4] ----
    xy = jax.random.uniform(k1, (2, 8, 2), jnp.float32, 0.0, 50.0)
    wh = jax.random.uniform(k2, (2, 8, 2), jnp.float32, 4.0, 30.0)
    boxes2d = jnp.concatenate([xy, xy + wh], axis=-1)              # [2, 8, 4]
    deltas2d = jax.random.normal(k3, (2, 8, 4), jnp.float32)

    ref2d = _xla_2d(boxes2d, deltas2d)
    pred2d = jax.block_until_ready(
        bbox_transform_2d(boxes2d, deltas2d, force_pallas=True))
    assert pred2d.shape == ref2d.shape
    assert jnp.allclose(pred2d, ref2d, atol=1e-4, rtol=1e-4)

    # default dispatch at this size takes the XLA fallback path
    pred2d_fb = jax.block_until_ready(bbox_transform_2d(boxes2d, deltas2d))
    assert jnp.allclose(pred2d_fb, ref2d, atol=1e-5, rtol=1e-5)

    # ---- 2D path, multi-step grid + ragged last block ----
    n_big = 2500                                  # rows=24, tile_r=16 -> grid=2
    xyb = jax.random.uniform(k1, (n_big, 2), jnp.float32, 0.0, 50.0)
    whb = jax.random.uniform(k2, (n_big, 2), jnp.float32, 4.0, 30.0)
    boxesb = jnp.concatenate([xyb, xyb + whb], axis=-1)
    deltasb = jax.random.normal(k3, (n_big, 4), jnp.float32)
    refb = _xla_2d(boxesb, deltasb)
    predb = jax.block_until_ready(
        bbox_transform_2d(boxesb, deltasb, force_pallas=True, max_tile_r=16))
    assert jnp.allclose(predb, refb, atol=1e-4, rtol=1e-4)

    # ---- 3D path: N=16 anchors, 3 classes ----
    N, T = 16, 3
    xy3 = jax.random.uniform(k1, (N, 2), jnp.float32, 0.0, 50.0)
    wh3 = jax.random.uniform(k2, (N, 2), jnp.float32, 4.0, 30.0)
    boxes3d = jnp.concatenate([xy3, xy3 + wh3], axis=-1)           # [N, 4]
    deltas3d = jax.random.normal(k4, (N, 12), jnp.float32)
    anchors_mean_std = jax.random.normal(k5, (N, T, 6, 2), jnp.float32)
    label_index = jax.random.randint(k6, (N,), 0, T)

    ref3d, refmask = _xla_3d(boxes3d, deltas3d, anchors_mean_std, label_index)
    pred3d, mask3d = bbox_transform_3d(boxes3d, deltas3d, anchors_mean_std,
                                       label_index, force_pallas=True)
    pred3d = jax.block_until_ready(pred3d)
    mask3d = jax.block_until_ready(mask3d)
    assert jnp.allclose(pred3d, ref3d, atol=1e-4, rtol=1e-4)
    assert jnp.array_equal(mask3d, refmask)

    print("KERNEL_OK")
</pallas_src>

<mosaic_0001>
module attributes {stable_mosaic.version = 11 : i64} {
  func.func @_bbox2d_kernel(%arg0: i32, %arg1: memref<8x8x128xf32, #tpu.memory_space<vmem>>, %arg2: memref<4x8x128xf32, #tpu.memory_space<vmem>>) attributes {dimension_semantics = [#tpu.dimension_semantics<parallel>], iteration_bounds = array<i64: 1>, scalar_prefetch = 0 : i64, scratch_operands = 0 : i64, tpu.core_type = #tpu.core_type<tc>, window_params = [{transform_indices = @transform_0, window_bounds = array<i64: 8, 8, 128>}, {transform_indices = @transform_1, window_bounds = array<i64: 4, 8, 128>}]} {
    %c0 = arith.constant 0 : index
    %c0_0 = arith.constant 0 : index
    %c0_1 = arith.constant 0 : index
    %0 = vector.load %arg1[%c0, %c0_0, %c0_1] : memref<8x8x128xf32, #tpu.memory_space<vmem>>, vector<1x8x128xf32>
    %1 = vector.shape_cast %0 : vector<1x8x128xf32> to vector<8x128xf32>
    %c1 = arith.constant 1 : index
    %c0_2 = arith.constant 0 : index
    %c0_3 = arith.constant 0 : index
    %2 = vector.load %arg1[%c1, %c0_2, %c0_3] : memref<8x8x128xf32, #tpu.memory_space<vmem>>, vector<1x8x128xf32>
    %3 = vector.shape_cast %2 : vector<1x8x128xf32> to vector<8x128xf32>
    %c2 = arith.constant 2 : index
    %c0_4 = arith.constant 0 : index
    %c0_5 = arith.constant 0 : index
    %4 = vector.load %arg1[%c2, %c0_4, %c0_5] : memref<8x8x128xf32, #tpu.memory_space<vmem>>, vector<1x8x128xf32>
    %5 = vector.shape_cast %4 : vector<1x8x128xf32> to vector<8x128xf32>
    %c3 = arith.constant 3 : index
    %c0_6 = arith.constant 0 : index
    %c0_7 = arith.constant 0 : index
    %6 = vector.load %arg1[%c3, %c0_6, %c0_7] : memref<8x8x128xf32, #tpu.memory_space<vmem>>, vector<1x8x128xf32>
    %7 = vector.shape_cast %6 : vector<1x8x128xf32> to vector<8x128xf32>
    %8 = arith.subf %5, %1 : vector<8x128xf32>
    %9 = arith.subf %7, %3 : vector<8x128xf32>
    %cst = arith.constant 5.000000e-01 : f32
    %10 = vector.broadcast %cst : f32 to vector<8x128xf32>
    %11 = arith.mulf %10, %8 : vector<8x128xf32>
    %12 = arith.addf %1, %11 : vector<8x128xf32>
    %cst_8 = arith.constant 5.000000e-01 : f32
    %13 = vector.broadcast %cst_8 : f32 to vector<8x128xf32>
    %14 = arith.mulf %13, %9 : vector<8x128xf32>
    %15 = arith.addf %3, %14 : vector<8x128xf32>
    %c4 = arith.constant 4 : index
    %c0_9 = arith.constant 0 : index
    %c0_10 = arith.constant 0 : index
    %16 = vector.load %arg1[%c4, %c0_9, %c0_10] : memref<8x8x128xf32, #tpu.memory_space<vmem>>, vector<1x8x128xf32>
    %17 = vector.shape_cast %16 : vector<1x8x128xf32> to vector<8x128xf32>
    %cst_11 = arith.constant 1.000000e-01 : f32
    %18 = vector.broadcast %cst_11 : f32 to vector<8x128xf32>
    %19 = arith.mulf %17, %18 : vector<8x128xf32>
    %cst_12 = arith.constant 0.000000e+00 : f32
    %20 = vector.broadcast %cst_12 : f32 to vector<8x128xf32>
    %21 = arith.addf %19, %20 : vector<8x128xf32>
    %c5 = arith.constant 5 : index
    %c0_13 = arith.constant 0 : index
    %c0_14 = arith.constant 0 : index
    %22 = vector.load %arg1[%c5, %c0_13, %c0_14] : memref<8x8x128xf32, #tpu.memory_space<vmem>>, vector<1x8x128xf32>
    %23 = vector.shape_cast %22 : vector<1x8x128xf32> to vector<8x128xf32>
    %cst_15 = arith.constant 1.000000e-01 : f32
    %24 = vector.broadcast %cst_15 : f32 to vector<8x128xf32>
    %25 = arith.mulf %23, %24 : vector<8x128xf32>
    %cst_16 = arith.constant 0.000000e+00 : f32
    %26 = vector.broadcast %cst_16 : f32 to vector<8x128xf32>
    %27 = arith.addf %25, %26 : vector<8x128xf32>
    %c6 = arith.constant 6 : index
    %c0_17 = arith.constant 0 : index
    %c0_18 = arith.constant 0 : index
    %28 = vector.load %arg1[%c6, %c0_17, %c0_18] : memref<8x8x128xf32, #tpu.memory_space<vmem>>, vector<1x8x128xf32>
    %29 = vector.shape_cast %28 : vector<1x8x128xf32> to vector<8x128xf32>
    %cst_19 = arith.constant 2.000000e-01 : f32
    %30 = vector.broadcast %cst_19 : f32 to vector<8x128xf32>
    %31 = arith.mulf %29, %30 : vector<8x128xf32>
    %cst_20 = arith.constant 0.000000e+00 : f32
    %32 = vector.broadcast %cst_20 : f32 to vector<8x128xf32>
    %33 = arith.addf %31, %32 : vector<8x128xf32>
    %c7 = arith.constant 7 : index
    %c0_21 = arith.constant 0 : index
    %c0_22 = arith.constant 0 : index
    %34 = vector.load %arg1[%c7, %c0_21, %c0_22] : memref<8x8x128xf32, #tpu.memory_space<vmem>>, vector<1x8x128xf32>
    %35 = vector.shape_cast %34 : vector<1x8x128xf32> to vector<8x128xf32>
    %cst_23 = arith.constant 2.000000e-01 : f32
    %36 = vector.broadcast %cst_23 : f32 to vector<8x128xf32>
    %37 = arith.mulf %35, %36 : vector<8x128xf32>
    %cst_24 = arith.constant 0.000000e+00 : f32
    %38 = vector.broadcast %cst_24 : f32 to vector<8x128xf32>
    %39 = arith.addf %37, %38 : vector<8x128xf32>
    %40 = arith.mulf %21, %8 : vector<8x128xf32>
    %41 = arith.addf %12, %40 : vector<8x128xf32>
    %42 = arith.mulf %27, %9 : vector<8x128xf32>
    %43 = arith.addf %15, %42 : vector<8x128xf32>
    %44 = math.exp %33 : vector<8x128xf32>
    %45 = arith.mulf %44, %8 : vector<8x128xf32>
    %46 = math.exp %39 : vector<8x128xf32>
    %47 = arith.mulf %46, %9 : vector<8x128xf32>
    %cst_25 = arith.constant 5.000000e-01 : f32
    %48 = vector.broadcast %cst_25 : f32 to vector<8x128xf32>
    %49 = arith.mulf %48, %45 : vector<8x128xf32>
    %50 = arith.subf %41, %49 : vector<8x128xf32>
    %c0_26 = arith.constant 0 : index
    %c0_27 = arith.constant 0 : index
    %c0_28 = arith.constant 0 : index
    %51 = vector.load %arg2[%c0_26, %c0_27, %c0_28] : memref<4x8x128xf32, #tpu.memory_space<vmem>>, vector<1x8x128xf32>
    %52 = vector.shape_cast %51 : vector<1x8x128xf32> to vector<8x128xf32>
    %53 = vector.shape_cast %50 : vector<8x128xf32> to vector<1x8x128xf32>
    tpu.vector_store %arg2[%c0_26, %c0_27, %c0_28], %53 {strides = array<i32>} : memref<4x8x128xf32, #tpu.memory_space<vmem>>, vector<1x8x128xf32>,
    %cst_29 = arith.constant 5.000000e-01 : f32
    %54 = vector.broadcast %cst_29 : f32 to vector<8x128xf32>
    %55 = arith.mulf %54, %47 : vector<8x128xf32>
    %56 = arith.subf %43, %55 : vector<8x128xf32>
    %c1_30 = arith.constant 1 : index
    %c0_31 = arith.constant 0 : index
    %c0_32 = arith.constant 0 : index
    %57 = vector.load %arg2[%c1_30, %c0_31, %c0_32] : memref<4x8x128xf32, #tpu.memory_space<vmem>>, vector<1x8x128xf32>
    %58 = vector.shape_cast %57 : vector<1x8x128xf32> to vector<8x128xf32>
    %59 = vector.shape_cast %56 : vector<8x128xf32> to vector<1x8x128xf32>
    tpu.vector_store %arg2[%c1_30, %c0_31, %c0_32], %59 {strides = array<i32>} : memref<4x8x128xf32, #tpu.memory_space<vmem>>, vector<1x8x128xf32>,
    %cst_33 = arith.constant 5.000000e-01 : f32
    %60 = vector.broadcast %cst_33 : f32 to vector<8x128xf32>
    %61 = arith.mulf %60, %45 : vector<8x128xf32>
    %62 = arith.addf %41, %61 : vector<8x128xf32>
    %c2_34 = arith.constant 2 : index
    %c0_35 = arith.constant 0 : index
    %c0_36 = arith.constant 0 : index
    %63 = vector.load %arg2[%c2_34, %c0_35, %c0_36] : memref<4x8x128xf32, #tpu.memory_space<vmem>>, vector<1x8x128xf32>
    %64 = vector.shape_cast %63 : vector<1x8x128xf32> to vector<8x128xf32>
    %65 = vector.shape_cast %62 : vector<8x128xf32> to vector<1x8x128xf32>
    tpu.vector_store %arg2[%c2_34, %c0_35, %c0_36], %65 {strides = array<i32>} : memref<4x8x128xf32, #tpu.memory_space<vmem>>, vector<1x8x128xf32>,
    %cst_37 = arith.constant 5.000000e-01 : f32
    %66 = vector.broadcast %cst_37 : f32 to vector<8x128xf32>
    %67 = arith.mulf %66, %47 : vector<8x128xf32>
    %68 = arith.addf %43, %67 : vector<8x128xf32>
    %c3_38 = arith.constant 3 : index
    %c0_39 = arith.constant 0 : index
    %c0_40 = arith.constant 0 : index
    %69 = vector.load %arg2[%c3_38, %c0_39, %c0_40] : memref<4x8x128xf32, #tpu.memory_space<vmem>>, vector<1x8x128xf32>
    %70 = vector.shape_cast %69 : vector<1x8x128xf32> to vector<8x128xf32>
    %71 = vector.shape_cast %68 : vector<8x128xf32> to vector<1x8x128xf32>
    tpu.vector_store %arg2[%c3_38, %c0_39, %c0_40], %71 {strides = array<i32>} : memref<4x8x128xf32, #tpu.memory_space<vmem>>, vector<1x8x128xf32>,
    return
  }
  func.func @transform_0(%arg0: i32) -> (i32, i32, i32) {
    %c0_i32 = arith.constant 0 : i32
    %c0_i32_0 = arith.constant 0 : i32
    %c0_i32_1 = arith.constant 0 : i32
    return %c0_i32, %arg0, %c0_i32_0 : i32, i32, i32
  }
  func.func @transform_1(%arg0: i32) -> (i32, i32, i32) {
    %c0_i32 = arith.constant 0 : i32
    %c0_i32_0 = arith.constant 0 : i32
    %c0_i32_1 = arith.constant 0 : i32
    return %c0_i32, %arg0, %c0_i32_0 : i32, i32, i32
  }
}

</mosaic_0001>

<llo_original>
// kernel: tpu_custom_call.1
$region0: #{tpu_custom_call.1}
  #allocation0 [shape = 'u32[]', space=smem, size = 0x4, offset = 0x4, fixed_abs, tag = 'smem constant byte address 0x4 - core index']
  #allocation1 [shape = 'u32[72,128]{1,0:T(1,128)}', space=vmem, size = 0x9000, scoped, tag = 'internal scratch']
  %s0 = inlined_call_operand.hbm [shape: f32[8,8,128], index: 0, kind: input, shape index: {}]
  %s1 = inlined_call_operand.hbm [shape: f32[4,8,128], index: 1, kind: output, shape index: {}]
  %s2 = sld [smem:[#allocation0]]
  $region18: #{tpu_custom_call.1} parent=0
    _
  %s4 = ssub.s32 1, %s2
  %s5 = scalar_select 0, %s4, %s2
  $region1: #{tpu_custom_call.1} parent=0
    #allocation2 [shape = 'u8[32768]{0}', space=vmem, size = 0x8000, scoped, tag = 'input window, operand 0, single buffered']
    #allocation3 [shape = 's32[1]{0}', space=sflag, size = 0x4, scoped, tag = 'scoped memory for tpu_custom_call.1']
    #allocation4 [shape = 's32[1]{0}', space=sflag, size = 0x4, scoped, tag = 'scoped memory for tpu_custom_call.1']
    #allocation5 [shape = 'u8[16384]{0}', space=vmem, size = 0x4000, scoped, tag = 'output window, operand 0, single buffered']
    %6 = vsyncpa [#allocation3], 0
    %7 = vsyncpa [#allocation4], 0
    // Predicated region
    $region2: #{tpu_custom_call.1} parent=1 // pred_check
      _
    $region3: #{tpu_custom_call.1} parent=1 // pred_check_branch
      %9 = sbr.rel (0) target = $region5
    $region4: #{tpu_custom_call.1} parent=1 // pred_region
      %11 = vsyncadd [#allocation3], 0
      %s12 = sshll.u32 %s0, 4
      %s13 = int_to_ptr.hbm [resolvable:$true] %s12
      %s14 = sshll.u32 [#allocation2], 4
      %s15 = int_to_ptr.vmem [resolvable:$true] %s14
      %20 = dma.hbm_to_vmem [thread:$0]  %s13, 1024, %s15, [#allocation3], 128, 128, 8
    $region5: #{tpu_custom_call.1} parent=1 // pred_fallthru
      _
    // Predicated region
    $region6: #{tpu_custom_call.1} parent=1 // pred_check
      _
    $region7: #{tpu_custom_call.1} parent=1 // pred_check_branch
      %22 = sbr.rel (0) target = $region9
    $region8: #{tpu_custom_call.1} parent=1 // pred_region
      %24 = dma.done [#allocation3], 1024
    $region9: #{tpu_custom_call.1} parent=1 // pred_fallthru
      _
    %v25 = vld [vmem:[#allocation2] sm:$0xff]
    %s26 = scalar_lea.vmem [#allocation2], 8
    %v27 = vld [vmem:[%s26] sm:$0xff]
    %s28 = scalar_lea.vmem [#allocation2], 16
    %v29 = vld [vmem:[%s28] sm:$0xff]
    %s30 = scalar_lea.vmem [#allocation2], 24
    %v31 = vld [vmem:[%s30] sm:$0xff]
    %v32 = vsub.f32 %v29, %v25
    %v33 = vsub.f32 %v31, %v27
    %v34 = vmul.f32 %v32, 0.5
    %v35 = vadd.f32 %v25, %v34
    %v36 = vmul.f32 %v33, 0.5
    %v37 = vadd.f32 %v27, %v36
    %s38 = scalar_lea.vmem [#allocation2], 32
    %v39 = vld [vmem:[%s38] sm:$0xff]
    %v40 = vmul.f32 %v39, 0.1
    %v41 = vadd.f32 %v40, 0.0
    %s42 = scalar_lea.vmem [#allocation2], 40
    %v43 = vld [vmem:[%s42] sm:$0xff]
    %v44 = vmul.f32 %v43, 0.1
    %v45 = vadd.f32 %v44, 0.0
    %s46 = scalar_lea.vmem [#allocation2], 48
    %v47 = vld [vmem:[%s46] sm:$0xff]
    %v48 = vmul.f32 %v47, 0.2
    %v49 = vadd.f32 %v48, 0.0
    %s50 = scalar_lea.vmem [#allocation2], 56
    %v51 = vld [vmem:[%s50] sm:$0xff]
    %v52 = vmul.f32 %v51, 0.2
    %v53 = vadd.f32 %v52, 0.0
    %v54 = vmul.f32 %v41, %v32
    %v55 = vadd.f32 %v35, %v54
    %v56 = vmul.f32 %v45, %v33
    %v57 = vadd.f32 %v37, %v56
    %v58 = vmul.f32 %v49, 1.442695
    %v59 = vpow.pop %v58
    %v60 = vmul.f32 %v59, %v32
    %v61 = vmul.f32 %v53, 1.442695
    %v62 = vpow.pop %v61
    %v63 = vmul.f32 %v62, %v33
    %v64 = vmul.f32 %v60, 0.5
    %v65 = vsub.f32 %v55, %v64
    %66 = vst [vmem:[#allocation5] sm:$0xff] %v65
    %v67 = vmul.f32 %v63, 0.5
    %v68 = vsub.f32 %v57, %v67
    %s69 = scalar_lea.vmem [#allocation5], 8
    %70 = vst [vmem:[%s69] sm:$0xff] %v68
    %v71 = vadd.f32 %v55, %v64
    %s72 = scalar_lea.vmem [#allocation5], 16
    %73 = vst [vmem:[%s72] sm:$0xff] %v71
    %v74 = vadd.f32 %v57, %v67
    %s75 = scalar_lea.vmem [#allocation5], 24
    %76 = vst [vmem:[%s75] sm:$0xff] %v74
    // Predicated region
    $region10: #{tpu_custom_call.1} parent=1 // pred_check
      _
    $region11: #{tpu_custom_call.1} parent=1 // pred_check_branch
      %78 = sbr.rel (0) target = $region13
    $region12: #{tpu_custom_call.1} parent=1 // pred_region
      %80 = vsyncadd [#allocation4], 0
      %s81 = sshll.u32 [#allocation5], 4
      %s82 = int_to_ptr.vmem [resolvable:$true] %s81
      %s83 = sshll.u32 %s1, 4
      %s84 = int_to_ptr.hbm [resolvable:$true] %s83
      %89 = dma.vmem_to_hbm [thread:$0]  %s82, 512, %s84, [#allocation4], 128, 128, 8
    $region13: #{tpu_custom_call.1} parent=1 // pred_fallthru
      _
    // Predicated region
    $region14: #{tpu_custom_call.1} parent=1 // pred_check
      _
    $region15: #{tpu_custom_call.1} parent=1 // pred_check_branch
      %91 = sbr.rel (0) target = $region17
    $region16: #{tpu_custom_call.1} parent=1 // pred_region
      %93 = dma.done [#allocation4], 512
    $region17: #{tpu_custom_call.1} parent=1 // pred_fallthru
      _
    %94 = vsyncpa [#allocation3], 1
    %95 = vsyncpa [#allocation4], 1

</llo_original>
